<compile_context>
chip_gen: v5e
topology: v5e:2x2
jax: 0.10.0
libtpu: 0.0.40
codegen_flags: <defaults>
</compile_context>

<pallas_src>
import jax
import jax.numpy as jnp
from jax import lax
from jax.experimental import pallas as pl
from jax.experimental.pallas import tpu as pltpu

EPS = 1e-5


def _adabn_kernel(x_ref, g_ref, b_ref, o_ref):
    # x_ref: (N, C_TILE, S) feature block (input dtype, possibly bf16)
    # g_ref: (N, C_TILE, 1) precomputed gamma = feats @ Wg + bg
    # b_ref: (N, C_TILE, 1) precomputed bias  = feats @ Wb + bb
    # o_ref: (N, C_TILE, S)
    n_elems = x_ref.shape[0] * x_ref.shape[2]                  # N * S
    inv_n = jnp.float32(1.0 / n_elems)

    # One-pass per-channel stats over (N, S), accumulated in f32, reading the
    # ref directly (no full-tile f32 copy held live across the kernel body).
    s = jnp.sum(x_ref[...], axis=(0, 2), keepdims=True, dtype=jnp.float32)   # (1,Ct,1)
    ss = jnp.sum(jnp.square(x_ref[...].astype(jnp.float32)),
                 axis=(0, 2), keepdims=True)                                 # (1,Ct,1)
    mean = s * inv_n
    var = jnp.maximum(ss * inv_n - mean * mean, 0.0)           # biased var (BN training)
    inv = lax.rsqrt(var + EPS)                                 # (1, Ct, 1)

    # Folded scale/shift: out = (x - mean) * inv * gamma + bias == x * a + b
    gamma = g_ref[...].astype(jnp.float32)                     # (N, Ct, 1)
    bias = b_ref[...].astype(jnp.float32)                      # (N, Ct, 1)
    a = gamma * inv
    b = bias - mean * a
    o_ref[...] = (x_ref[...].astype(jnp.float32) * a + b).astype(o_ref.dtype)


def _pick_c_tile(N, C, S, in_itemsize, out_itemsize, block_budget_bytes, align):
    """Pick (c_tile, grid, padded_C).

    Accounts for double-buffered input + output tiles plus ~2 transient f32
    copies per element. Prefers a tile that (a) fits the per-step budget,
    (b) yields ~8 grid steps for pipeline overlap, (c) gives grid >= 2 so both
    v7x TensorCores get work, and (d) divides C exactly (no padding) when an
    aligned divisor exists.
    """
    if C <= align:
        return C, 1, C                       # full-C block: always lane-legal
    per_c = N * S * (2 * in_itemsize + 2 * out_itemsize + 2 * 4)
    budget_tile = max(align, (block_budget_bytes // max(per_c, 1)) // align * align)
    target_steps = 8                         # keep the BlockSpec pipeline busy
    steps_tile = max(align, ((pl.cdiv(C, target_steps) + align - 1) // align) * align)
    cap = min(budget_tile, steps_tile)
    if C >= 2 * align:                       # guarantee >= 2 grid steps (megacore)
        cap = min(cap, max(align, (C // 2) // align * align))
    # Prefer an aligned exact divisor of C (no channel padding / extra HBM copy).
    t = cap
    while t >= align:
        if C % t == 0:
            return t, C // t, C
        t -= align
    # Fall back: cdiv grid with padded channels (independent stats, sliced off).
    grid_c = pl.cdiv(C, cap)
    return cap, grid_c, grid_c * cap


def adaptive_batch_norm(g_features, noise, embed, gamma_w, gamma_b, bias_w, bias_b):
    """g_features: (N, C, D, H, W); noise: (N, noise_dim); embed: (N, embed_dim).
    gamma_w / bias_w: (F, C) with F = noise_dim + embed_dim (pre-transposed for
    x @ W, i.e. PyTorch's linear.weight.T); gamma_b / bias_b: (C,).
    Returns (N, C, D, H, W) in g_features.dtype."""
    N, C, D, H, W = g_features.shape
    S = D * H * W
    x = g_features.reshape(N, C, S)          # S is the lane-dense last axis

    # Tiny Linear heads hoisted out of the kernel, fused into one (F, 2C) GEMM
    # in XLA (<<1% of the work; keeps the weights out of the hot loop).
    feats = jnp.concatenate([noise, embed], axis=1)       # torch.cat([noise, embed], 1)
    w_cat = jnp.concatenate([gamma_w, bias_w], axis=1)    # (F, 2C)
    b_cat = jnp.concatenate([gamma_b, bias_b], axis=0)    # (2C,)
    gb = (feats @ w_cat + b_cat).astype(jnp.float32)      # (N, 2C)
    gamma = gb[:, :C, None]                               # (N, C, 1) lane-legal layout
    bias = gb[:, C:, None]                                # (N, C, 1)

    # Generation-aware VMEM sizing: ~25% headroom under physical capacity
    # (≈48 MiB on v7x, ≈96 MiB on v5e/v6e); 12 MiB per-step block budget.
    try:
        vmem_cap = int(pltpu.get_tpu_info().vmem_capacity_bytes)
    except Exception:
        vmem_cap = 64 << 20                               # conservative (v7x per-TC)
    vmem_limit = (vmem_cap * 3) // 4
    block_budget = min(12 << 20, vmem_limit // 3)

    itemsize = jnp.dtype(g_features.dtype).itemsize
    align = 16 if itemsize == 2 else 8                    # bf16 sublane packing
    c_tile, grid_c, c_pad = _pick_c_tile(N, C, S, itemsize, itemsize,
                                         block_budget, align)
    if c_pad != C:
        pad = c_pad - C
        x = jnp.pad(x, ((0, 0), (0, pad), (0, 0)))
        gamma = jnp.pad(gamma, ((0, 0), (0, pad), (0, 0)))
        bias = jnp.pad(bias, ((0, 0), (0, pad), (0, 0)))

    out = pl.pallas_call(
        _adabn_kernel,
        out_shape=jax.ShapeDtypeStruct((N, c_pad, S), g_features.dtype),
        grid=(grid_c,),
        in_specs=[
            pl.BlockSpec((N, c_tile, S), lambda c: (0, c, 0)),
            pl.BlockSpec((N, c_tile, 1), lambda c: (0, c, 0)),
            pl.BlockSpec((N, c_tile, 1), lambda c: (0, c, 0)),
        ],
        out_specs=pl.BlockSpec((N, c_tile, S), lambda c: (0, c, 0)),
        compiler_params=pltpu.CompilerParams(
            dimension_semantics=("parallel",),   # channel tiles independent → 2-TC sharding
            vmem_limit_bytes=int(vmem_limit),
        ),
    )(x, gamma, bias)

    if c_pad != C:
        out = out[:, :C, :]
    return out.reshape(N, C, D, H, W)


def _reference(g_features, noise, embed, gamma_w, gamma_b, bias_w, bias_b):
    feats = jnp.concatenate([noise, embed], axis=1)
    gamma = feats @ gamma_w + gamma_b              # (N, C)
    bias = feats @ bias_w + bias_b                 # (N, C)
    mean = jnp.mean(g_features, axis=(0, 2, 3, 4), keepdims=True)
    var = jnp.mean(jnp.square(g_features - mean), axis=(0, 2, 3, 4), keepdims=True)
    xn = (g_features - mean) * lax.rsqrt(var + EPS)
    return xn * gamma[:, :, None, None, None] + bias[:, :, None, None, None]


if __name__ == "__main__":
    key = jax.random.PRNGKey(0)

    def run_case(k, N, C, D, H, W, noise_dim, embed_dim, dtype, tol):
        F = noise_dim + embed_dim
        ks = jax.random.split(k, 7)
        x = jax.random.normal(ks[0], (N, C, D, H, W), jnp.float32)
        noise = jax.random.normal(ks[1], (N, noise_dim), jnp.float32)
        embed = jax.random.normal(ks[2], (N, embed_dim), jnp.float32)
        # PyTorch-style Linear init: U(-1/sqrt(fan_in), 1/sqrt(fan_in))
        bound = 1.0 / (F ** 0.5)
        gamma_w = jax.random.uniform(ks[3], (F, C), jnp.float32, -bound, bound)
        gamma_b = jax.random.uniform(ks[4], (C,), jnp.float32, -bound, bound)
        bias_w = jax.random.uniform(ks[5], (F, C), jnp.float32, -bound, bound)
        bias_b = jax.random.uniform(ks[6], (C,), jnp.float32, -bound, bound)

        x_in = x.astype(dtype)
        out = adaptive_batch_norm(x_in, noise, embed, gamma_w, gamma_b, bias_w, bias_b)
        out = jax.block_until_ready(out)
        ref = _reference(x_in.astype(jnp.float32), noise, embed,
                         gamma_w, gamma_b, bias_w, bias_b)
        assert out.shape == (N, C, D, H, W)
        assert jnp.allclose(out.astype(jnp.float32), ref, atol=tol, rtol=tol), (
            f"mismatch vs pure-JAX reference (C={C}, dtype={dtype})")

    k1, k2, k3 = jax.random.split(key, 3)
    # 1) Small shape matching the module (single channel tile, grid of 1).
    run_case(k1, N=2, C=4, D=4, H=8, W=8, noise_dim=8, embed_dim=24,
             dtype=jnp.float32, tol=1e-4)
    # 2) Exercises the channel-tiled path in f32 (c_tile=8 < C=16, grid of 2),
    #    validating the lane-legal (N, c_tile, 1) gamma/bias BlockSpec.
    run_case(k2, N=2, C=16, D=4, H=8, W=8, noise_dim=8, embed_dim=24,
             dtype=jnp.float32, tol=1e-4)
    # 3) Exercises the bf16 path (align=16, c_tile=16 < C=32, grid of 2).
    run_case(k3, N=2, C=32, D=4, H=8, W=8, noise_dim=8, embed_dim=24,
             dtype=jnp.bfloat16, tol=7e-2)

    print("KERNEL_OK")
</pallas_src>

<mosaic_0001>
module attributes {stable_mosaic.version = 11 : i64} {
  func.func @_adabn_kernel(%arg0: i32, %arg1: memref<2x4x256xf32, #tpu.memory_space<vmem>>, %arg2: memref<2x4x1xf32, #tpu.memory_space<vmem>>, %arg3: memref<2x4x1xf32, #tpu.memory_space<vmem>>, %arg4: memref<2x4x256xf32, #tpu.memory_space<vmem>>) attributes {dimension_semantics = [#tpu.dimension_semantics<parallel>], iteration_bounds = array<i64: 1>, scalar_prefetch = 0 : i64, scratch_operands = 0 : i64, tpu.core_type = #tpu.core_type<tc>, window_params = [{transform_indices = @transform_0, window_bounds = array<i64: 2, 4, 256>}, {transform_indices = @transform_1, window_bounds = array<i64: 2, 4, 1>}, {transform_indices = @transform_2, window_bounds = array<i64: 2, 4, 1>}, {transform_indices = @transform_3, window_bounds = array<i64: 2, 4, 256>}]} {
    %c0 = arith.constant 0 : index
    %c0_0 = arith.constant 0 : index
    %c0_1 = arith.constant 0 : index
    %0 = vector.load %arg1[%c0, %c0_0, %c0_1] : memref<2x4x256xf32, #tpu.memory_space<vmem>>, vector<2x4x256xf32>
    %cst = arith.constant dense<0.000000e+00> : vector<4xf32>
    %1 = vector.multi_reduction <add>, %0, %cst [0, 2] : vector<2x4x256xf32> to vector<4xf32>
    %2 = vector.shape_cast %1 : vector<4xf32> to vector<1x4x1xf32>
    %c0_2 = arith.constant 0 : index
    %c0_3 = arith.constant 0 : index
    %c0_4 = arith.constant 0 : index
    %3 = vector.load %arg1[%c0_2, %c0_3, %c0_4] : memref<2x4x256xf32, #tpu.memory_space<vmem>>, vector<2x4x256xf32>
    %4 = arith.mulf %3, %3 : vector<2x4x256xf32>
    %cst_5 = arith.constant dense<0.000000e+00> : vector<4xf32>
    %5 = vector.multi_reduction <add>, %4, %cst_5 [0, 2] : vector<2x4x256xf32> to vector<4xf32>
    %6 = vector.shape_cast %5 : vector<4xf32> to vector<1x4x1xf32>
    %cst_6 = arith.constant 0.001953125 : f32
    %7 = vector.broadcast %cst_6 : f32 to vector<1x4x1xf32>
    %8 = arith.mulf %2, %7 : vector<1x4x1xf32>
    %cst_7 = arith.constant 0.001953125 : f32
    %9 = vector.broadcast %cst_7 : f32 to vector<1x4x1xf32>
    %10 = arith.mulf %6, %9 : vector<1x4x1xf32>
    %11 = arith.mulf %8, %8 : vector<1x4x1xf32>
    %12 = arith.subf %10, %11 : vector<1x4x1xf32>
    %cst_8 = arith.constant 0.000000e+00 : f32
    %13 = vector.broadcast %cst_8 : f32 to vector<1x4x1xf32>
    %14 = arith.maximumf %12, %13 : vector<1x4x1xf32>
    %cst_9 = arith.constant 9.99999974E-6 : f32
    %15 = vector.broadcast %cst_9 : f32 to vector<1x4x1xf32>
    %16 = arith.addf %14, %15 : vector<1x4x1xf32>
    %17 = math.rsqrt %16 : vector<1x4x1xf32>
    %c0_10 = arith.constant 0 : index
    %c0_11 = arith.constant 0 : index
    %c0_12 = arith.constant 0 : index
    %18 = vector.load %arg2[%c0_10, %c0_11, %c0_12] : memref<2x4x1xf32, #tpu.memory_space<vmem>>, vector<2x4x1xf32>
    %c0_13 = arith.constant 0 : index
    %c0_14 = arith.constant 0 : index
    %c0_15 = arith.constant 0 : index
    %19 = vector.load %arg3[%c0_13, %c0_14, %c0_15] : memref<2x4x1xf32, #tpu.memory_space<vmem>>, vector<2x4x1xf32>
    %20 = vector.broadcast %17 : vector<1x4x1xf32> to vector<2x4x1xf32>
    %21 = arith.mulf %18, %20 : vector<2x4x1xf32>
    %22 = vector.broadcast %8 : vector<1x4x1xf32> to vector<2x4x1xf32>
    %23 = arith.mulf %22, %21 : vector<2x4x1xf32>
    %24 = arith.subf %19, %23 : vector<2x4x1xf32>
    %c0_16 = arith.constant 0 : index
    %c0_17 = arith.constant 0 : index
    %c0_18 = arith.constant 0 : index
    %25 = vector.load %arg1[%c0_16, %c0_17, %c0_18] : memref<2x4x256xf32, #tpu.memory_space<vmem>>, vector<2x4x256xf32>
    %26 = vector.broadcast %21 : vector<2x4x1xf32> to vector<2x4x256xf32>
    %27 = arith.mulf %25, %26 : vector<2x4x256xf32>
    %28 = vector.broadcast %24 : vector<2x4x1xf32> to vector<2x4x256xf32>
    %29 = arith.addf %27, %28 : vector<2x4x256xf32>
    %c0_19 = arith.constant 0 : index
    %c0_20 = arith.constant 0 : index
    %c0_21 = arith.constant 0 : index
    %30 = vector.load %arg4[%c0_19, %c0_20, %c0_21] : memref<2x4x256xf32, #tpu.memory_space<vmem>>, vector<2x4x256xf32>
    tpu.vector_store %arg4[%c0_19, %c0_20, %c0_21], %29 {strides = array<i32>} : memref<2x4x256xf32, #tpu.memory_space<vmem>>, vector<2x4x256xf32>,
    return
  }
  func.func @transform_0(%arg0: i32) -> (i32, i32, i32) {
    %c0_i32 = arith.constant 0 : i32
    %c0_i32_0 = arith.constant 0 : i32
    %c0_i32_1 = arith.constant 0 : i32
    return %c0_i32, %arg0, %c0_i32_0 : i32, i32, i32
  }
  func.func @transform_1(%arg0: i32) -> (i32, i32, i32) {
    %c0_i32 = arith.constant 0 : i32
    %c0_i32_0 = arith.constant 0 : i32
    %c0_i32_1 = arith.constant 0 : i32
    return %c0_i32, %arg0, %c0_i32_0 : i32, i32, i32
  }
  func.func @transform_2(%arg0: i32) -> (i32, i32, i32) {
    %c0_i32 = arith.constant 0 : i32
    %c0_i32_0 = arith.constant 0 : i32
    %c0_i32_1 = arith.constant 0 : i32
    return %c0_i32, %arg0, %c0_i32_0 : i32, i32, i32
  }
  func.func @transform_3(%arg0: i32) -> (i32, i32, i32) {
    %c0_i32 = arith.constant 0 : i32
    %c0_i32_0 = arith.constant 0 : i32
    %c0_i32_1 = arith.constant 0 : i32
    return %c0_i32, %arg0, %c0_i32_0 : i32, i32, i32
  }
}

</mosaic_0001>

<llo_original>
// kernel: tpu_custom_call.1
$region0: #{tpu_custom_call.1}
  #allocation0 [shape = 'u32[]', space=smem, size = 0x4, offset = 0x4, fixed_abs, tag = 'smem constant byte address 0x4 - core index']
  #allocation1 [shape = 'u32[72,128]{1,0:T(1,128)}', space=vmem, size = 0x9000, scoped, tag = 'internal scratch']
  %s0 = inlined_call_operand.vmem [shape: f32[2,4,256], index: 0, kind: input, shape index: {}]
  %s1 = inlined_call_operand.vmem [shape: f32[2,4,1], index: 1, kind: input, shape index: {}]
  %s2 = inlined_call_operand.vmem [shape: f32[2,4,1], index: 2, kind: input, shape index: {}]
  %s3 = inlined_call_operand.hbm [shape: f32[2,4,256], index: 3, kind: output, shape index: {}]
  %s4 = sld [smem:[#allocation0]]
  $region22: #{tpu_custom_call.1} parent=0
    _
  %s6 = ssub.s32 1, %s4
  %s7 = scalar_select 0, %s6, %s4
  $region1: #{tpu_custom_call.1} parent=0
    #allocation2 [shape = 'u8[8192]{0}', space=vmem, size = 0x2000, scoped, tag = 'output window, operand 0, single buffered']
    #allocation3 [shape = 's32[1]{0}', space=sflag, size = 0x4, scoped, tag = 'scoped memory for tpu_custom_call.1']
    %8 = vsyncpa [#allocation3], 0
    // Predicated region
    $region2: #{tpu_custom_call.1} parent=1 // pred_check
      _
    $region3: #{tpu_custom_call.1} parent=1 // pred_check_branch
      %10 = sbr.rel (0) target = $region5
    $region4: #{tpu_custom_call.1} parent=1 // pred_region
      _
    $region5: #{tpu_custom_call.1} parent=1 // pred_fallthru
      _
    // Predicated region
    $region6: #{tpu_custom_call.1} parent=1 // pred_check
      _
    $region7: #{tpu_custom_call.1} parent=1 // pred_check_branch
      %12 = sbr.rel (0) target = $region9
    $region8: #{tpu_custom_call.1} parent=1 // pred_region
      _
    $region9: #{tpu_custom_call.1} parent=1 // pred_fallthru
      _
    // Predicated region
    $region10: #{tpu_custom_call.1} parent=1 // pred_check
      _
    $region11: #{tpu_custom_call.1} parent=1 // pred_check_branch
      %14 = sbr.rel (0) target = $region13
    $region12: #{tpu_custom_call.1} parent=1 // pred_region
      _
    $region13: #{tpu_custom_call.1} parent=1 // pred_fallthru
      _
    %v15 = vld [vmem:[%s0] sm:$0xff]
    %v16 = vld [vmem:[%s0 + $0x8] sm:$0xff]
    %19 = vst [vmem:[#allocation1] ss:$2 sm:$0xff] %v15
    %v20 = vld.sshfl [vmem:[#allocation1] sm:$0xff pattern:$0x75316420]
    %v21 = vld.sshfl [vmem:[#allocation1 + $0x8] sm:$0xff pattern:$0x75316420]
    %s22 = scalar_lea.vmem [#allocation1], 16
    %23 = vst [vmem:[%s22] ss:$2 sm:$0xff] %v16
    %v24 = vld.sshfl [vmem:[#allocation1 + $0x10] sm:$0xff pattern:$0x75316420]
    %v25 = vld.sshfl [vmem:[#allocation1 + $0x18] sm:$0xff pattern:$0x75316420]
    %vm30 = vcmask 1043456
    %v31 = vsel %vm30, %v20, 0.0
    %v32 = vsel %vm30, %v21, 0.0
    %v33 = vadd.f32 %v31, %v32
    %v34 = vsel %vm30, %v24, 0.0
    %v35 = vadd.f32 %v33, %v34
    %v36 = vsel %vm30, %v25, 0.0
    %v37 = vadd.f32 %v35, %v36
    %38 = vadd.xlane.f32.xlu0 %v37
    %v39 = vpop.xlane.xlu0 %38
    %v40 = vmul.f32 %v15, %v15
    %v41 = vmul.f32 %v16, %v16
    %44 = vst [vmem:[#allocation1] ss:$2 sm:$0xff] %v40
    %v45 = vld.sshfl [vmem:[#allocation1] sm:$0xff pattern:$0x75316420]
    %v46 = vld.sshfl [vmem:[#allocation1 + $0x8] sm:$0xff pattern:$0x75316420]
    %s47 = scalar_lea.vmem [#allocation1], 16
    %48 = vst [vmem:[%s47] ss:$2 sm:$0xff] %v41
    %v49 = vld.sshfl [vmem:[#allocation1 + $0x10] sm:$0xff pattern:$0x75316420]
    %v50 = vld.sshfl [vmem:[#allocation1 + $0x18] sm:$0xff pattern:$0x75316420]
    %v55 = vsel %vm30, %v45, 0.0
    %v56 = vsel %vm30, %v46, 0.0
    %v57 = vadd.f32 %v55, %v56
    %v58 = vsel %vm30, %v49, 0.0
    %v59 = vadd.f32 %v57, %v58
    %v60 = vsel %vm30, %v50, 0.0
    %v61 = vadd.f32 %v59, %v60
    %62 = vadd.xlane.f32.xlu0 %v61
    %v63 = vpop.xlane.xlu0 %62
    %v64 = vmul.f32 %v39, 0.001953125
    %v65 = vmul.f32 %v63, 0.001953125
    %v66 = vmul.f32 %v64, %v64
    %v67 = vsub.f32 %v65, %v66
    %v68 = vmax.f32 %v67, 0.0
    %v69 = vadd.f32 %v68, 1e-05
    %v70 = vrsqrt.pop %v69
    %v71 = vmul.f32 %v70, %v69
    %v72 = vmul.f32 %v71, %v70
    %v73 = vmul.f32 0.5, %v72
    %v74 = vsub.f32 1.5, %v73
    %v75 = vmul.f32 %v70, %v74
    %vm76 = vweird.f32 %v69
    %vm77 = vweird.f32 %v70
    %vm78 = vmor %vm76, %vm77
    %v79 = vsel %vm78, %v70, %v75
    %v80 = vld [vmem:[%s1] sm:$0xf]
    %v81 = vld [vmem:[%s1 + $0x4] sm:$0xf]
    %v82 = vld [vmem:[%s2] sm:$0xf]
    %v83 = vld [vmem:[%s2 + $0x4] sm:$0xf]
    %v84 = vmul.f32 %v80, %v79
    %v85 = vmul.f32 %v81, %v79
    %v86 = vmul.f32 %v64, %v84
    %v87 = vmul.f32 %v64, %v85
    %v88 = vsub.f32 %v82, %v86
    %v89 = vsub.f32 %v83, %v87
    %91 = vset.pattern.permute.xlu0 0
    %92 = vperm.xlu0 %91, %v84
    %v93 = vpop.permute.xlu0 %92
    %95 = vset.pattern.permute.xlu0 0
    %96 = vperm.xlu0 %95, %v85
    %v97 = vpop.permute.xlu0 %96
    %v99 = vunpack.c.l.s4 839922192
    %v100 = vunpack.c.0.s8 %v99
    %v101 = vperm.slane %v93, %v100
    %v103 = vunpack.c.l.s4 839922192
    %v104 = vunpack.c.0.s8 %v103
    %v105 = vperm.slane %v97, %v104
    %v108 = vmul.f32 %v15, %v101
    %v109 = vmul.f32 %v16, %v105
    %111 = vset.pattern.permute.xlu0 0
    %112 = vperm.xlu0 %111, %v88
    %v113 = vpop.permute.xlu0 %112
    %115 = vset.pattern.permute.xlu0 0
    %116 = vperm.xlu0 %115, %v89
    %v117 = vpop.permute.xlu0 %116
    %v119 = vunpack.c.l.s4 839922192
    %v120 = vunpack.c.0.s8 %v119
    %v121 = vperm.slane %v113, %v120
    %v123 = vunpack.c.l.s4 839922192
    %v124 = vunpack.c.0.s8 %v123
    %v125 = vperm.slane %v117, %v124
    %v128 = vadd.f32 %v108, %v121
    %v129 = vadd.f32 %v109, %v125
    %130 = vst [vmem:[#allocation2] sm:$0xff] %v128
    %131 = vst [vmem:[#allocation2 + $0x8] sm:$0xff] %v129
    // Predicated region
    $region14: #{tpu_custom_call.1} parent=1 // pred_check
      _
    $region15: #{tpu_custom_call.1} parent=1 // pred_check_branch
      %133 = sbr.rel (0) target = $region17
    $region16: #{tpu_custom_call.1} parent=1 // pred_region
      %135 = vsyncadd [#allocation3], 0
      %s136 = sshll.u32 [#allocation2], 4
      %s137 = int_to_ptr.vmem [resolvable:$true] %s136
      %s138 = sshll.u32 %s3, 4
      %s139 = int_to_ptr.hbm [resolvable:$true] %s138
      %144 = dma.vmem_to_hbm [thread:$0]  %s137, 256, %s139, [#allocation3], 128, 128, 8
    $region17: #{tpu_custom_call.1} parent=1 // pred_fallthru
      _
    // Predicated region
    $region18: #{tpu_custom_call.1} parent=1 // pred_check
      _
    $region19: #{tpu_custom_call.1} parent=1 // pred_check_branch
      %146 = sbr.rel (0) target = $region21
    $region20: #{tpu_custom_call.1} parent=1 // pred_region
      %148 = dma.done [#allocation3], 256
    $region21: #{tpu_custom_call.1} parent=1 // pred_fallthru
      _
    %149 = vsyncpa [#allocation3], 1

</llo_original>
